<compile_context>
chip_gen: v5e
topology: v5e:2x2
jax: 0.10.0
libtpu: 0.0.40
codegen_flags: <defaults>
</compile_context>

<pallas_src>
import functools
import warnings

import jax
import jax.numpy as jnp
from jax.experimental import pallas as pl
from jax.experimental.pallas import tpu as pltpu

_LANE = 128
_TARGET_BLOCK_BYTES = 4 * 1024 * 1024  # ~4 MiB per block (perf-review target)


def _identity_kernel(x_ref, o_ref):
    # Straight VMEM copy of the current tile.
    o_ref[...] = x_ref[...]


def _min_sublane(dtype) -> int:
    """Native sublane packing: 8 for 4-byte, 16 for 2-byte, 32 for 1-byte dtypes."""
    itemsize = jnp.dtype(dtype).itemsize
    return max(8, 32 // max(1, itemsize))


def _two_tensorcore_chip() -> bool:
    """Heuristic gate for v7x-class chips (2 TensorCores per chip)."""
    try:
        kind = jax.devices()[0].device_kind.lower()
    except Exception:
        return False
    return ("v7" in kind) or ("7x" in kind)


def _compiler_params(grid_len: int, block_bytes: int) -> pltpu.CompilerParams:
    if grid_len >= 4 and _two_tensorcore_chip():
        dims = (pltpu.CORE_PARALLEL,)   # actually split rows across the two TCs
    else:
        dims = ("parallel",)
    # (1 in + 1 out) x double-buffer = 4 x block_bytes; add headroom, raise
    # v5e's 16 MiB scoped default, stay well under v7x's 64 MiB physical VMEM.
    vmem_limit = int(min(48 << 20, max(16 << 20, 6 * block_bytes)))
    return pltpu.CompilerParams(dimension_semantics=dims,
                                vmem_limit_bytes=vmem_limit)


def _tiled_copy_2d(x2, *, alias_in_out: bool):
    """Tiled (rows, lanes) HBM->VMEM->HBM copy with byte-sized blocks."""
    rows, lanes = x2.shape
    itemsize = jnp.dtype(x2.dtype).itemsize
    min_sub = _min_sublane(x2.dtype)
    target_rows = max(1, _TARGET_BLOCK_BYTES // (lanes * itemsize))
    if rows <= target_rows:
        tr = rows                                   # full row extent -> always legal
    else:
        tr = max(min_sub, (target_rows // min_sub) * min_sub)
    grid0 = pl.cdiv(rows, tr)                       # ragged last block is masked
    block_bytes = tr * lanes * itemsize
    alias = {0: 0} if alias_in_out else {}
    return pl.pallas_call(
        _identity_kernel,
        out_shape=jax.ShapeDtypeStruct((rows, lanes), x2.dtype),
        grid=(grid0,),
        in_specs=[pl.BlockSpec((tr, lanes), lambda i: (i, 0))],
        out_specs=pl.BlockSpec((tr, lanes), lambda i: (i, 0)),
        compiler_params=_compiler_params(grid0, block_bytes),
        input_output_aliases=alias,
    )(x2)


def empty_module_forward(x, *, alias_in_out: bool = False):
    """Identity forward pass of `emptyModule`, routed through a Pallas copy kernel.

    The cheapest correct implementation is simply `return x`; the kernel exists
    for API parity.  With alias_in_out=True and a donated input (under jit) the
    copy happens in place, avoiding a second full-tensor HBM allocation.
    """
    orig_shape = x.shape
    n = x.size
    if n == 0:
        return x  # nothing to copy

    if n % _LANE == 0:
        # Lane-dense path: widest lane dim that divides n.
        lanes = _LANE
        for cand in (1024, 512, 256):
            if n % cand == 0:
                lanes = cand
                break
        x2 = x.reshape(n // lanes, lanes)
        out = _tiled_copy_2d(x2, alias_in_out=alias_in_out)
        return out.reshape(orig_shape)

    # Ragged fallback: (1, n) view, 128-multiple chunks along the lane axis.
    # Only the final partial chunk is masked; no whole-array VMEM block ever.
    x2 = x.reshape(1, n)
    itemsize = jnp.dtype(x.dtype).itemsize
    if n < _LANE:
        tile = n                                     # full extent -> legal block
    else:
        target = max(_LANE, (_TARGET_BLOCK_BYTES // itemsize) // _LANE * _LANE)
        tile = min(target, (n // _LANE) * _LANE)
    grid0 = pl.cdiv(n, tile)
    alias = {0: 0} if alias_in_out else {}
    out = pl.pallas_call(
        _identity_kernel,
        out_shape=jax.ShapeDtypeStruct((1, n), x.dtype),
        grid=(grid0,),
        in_specs=[pl.BlockSpec((1, tile), lambda i: (0, i))],
        out_specs=pl.BlockSpec((1, tile), lambda i: (0, i)),
        compiler_params=_compiler_params(grid0, tile * itemsize),
        input_output_aliases=alias,
    )(x2)
    return out.reshape(orig_shape)


if __name__ == "__main__":
    # Shapes consistent with how the module is used in cpfssr: NCHW activations.
    B, C, H, W = 2, 4, 16, 16
    key = jax.random.PRNGKey(0)
    x = jax.random.normal(key, (B, C, H, W), dtype=jnp.float32)

    # Plain copy-kernel path.
    out = jax.block_until_ready(empty_module_forward(x))
    assert out.shape == x.shape and out.dtype == x.dtype
    assert bool(jnp.all(out == x)), "identity kernel mismatch"

    # Aliased (in-place) path: donate a throwaway copy under jit so the output
    # buffer is the donated input buffer (input_output_aliases={0: 0}).
    with warnings.catch_warnings():
        warnings.simplefilter("ignore")
        fwd_inplace = jax.jit(
            functools.partial(empty_module_forward, alias_in_out=True),
            donate_argnums=0,
        )
        x_donated = x + 0.0            # fresh buffer we are allowed to donate
        out2 = jax.block_until_ready(fwd_inplace(x_donated))
    assert out2.shape == x.shape and out2.dtype == x.dtype
    assert bool(jnp.all(out2 == x)), "aliased identity kernel mismatch"

    print("KERNEL_OK")
</pallas_src>

<mosaic_0001>
module attributes {stable_mosaic.version = 11 : i64} {
  func.func @_identity_kernel(%arg0: i32, %arg1: memref<2x1024xf32, #tpu.memory_space<vmem>>, %arg2: memref<2x1024xf32, #tpu.memory_space<vmem>>) attributes {dimension_semantics = [#tpu.dimension_semantics<parallel>], iteration_bounds = array<i64: 1>, scalar_prefetch = 0 : i64, scratch_operands = 0 : i64, tpu.core_type = #tpu.core_type<tc>, window_params = [{transform_indices = @transform_0, window_bounds = array<i64: 2, 1024>}, {transform_indices = @transform_1, window_bounds = array<i64: 2, 1024>}]} {
    %c0 = arith.constant 0 : index
    %c0_0 = arith.constant 0 : index
    %0 = vector.load %arg1[%c0, %c0_0] : memref<2x1024xf32, #tpu.memory_space<vmem>>, vector<2x1024xf32>
    %c0_1 = arith.constant 0 : index
    %c0_2 = arith.constant 0 : index
    %1 = vector.load %arg2[%c0_1, %c0_2] : memref<2x1024xf32, #tpu.memory_space<vmem>>, vector<2x1024xf32>
    tpu.vector_store %arg2[%c0_1, %c0_2], %0 {strides = array<i32>} : memref<2x1024xf32, #tpu.memory_space<vmem>>, vector<2x1024xf32>,
    return
  }
  func.func @transform_0(%arg0: i32) -> (i32, i32) {
    %c0_i32 = arith.constant 0 : i32
    %c0_i32_0 = arith.constant 0 : i32
    return %arg0, %c0_i32 : i32, i32
  }
  func.func @transform_1(%arg0: i32) -> (i32, i32) {
    %c0_i32 = arith.constant 0 : i32
    %c0_i32_0 = arith.constant 0 : i32
    return %arg0, %c0_i32 : i32, i32
  }
}

</mosaic_0001>

<llo_original>
// kernel: tpu_custom_call.1
$region0: #{tpu_custom_call.1}
  #allocation0 [shape = 'u32[]', space=smem, size = 0x4, offset = 0x4, fixed_abs, tag = 'smem constant byte address 0x4 - core index']
  #allocation1 [shape = 'u32[72,128]{1,0:T(1,128)}', space=vmem, size = 0x9000, scoped, tag = 'internal scratch']
  %s0 = inlined_call_operand.hbm [shape: f32[2,1024], index: 0, kind: input, shape index: {}]
  %s1 = inlined_call_operand.hbm [shape: f32[2,1024], index: 1, kind: output, shape index: {}]
  %s2 = sld [smem:[#allocation0]]
  $region18: #{tpu_custom_call.1} parent=0
    _
  %s4 = ssub.s32 1, %s2
  %s5 = scalar_select 0, %s4, %s2
  $region1: #{tpu_custom_call.1} parent=0
    #allocation2 [shape = 'u8[8192]{0}', space=vmem, size = 0x2000, scoped, tag = 'input window, operand 0, single buffered']
    #allocation3 [shape = 's32[1]{0}', space=sflag, size = 0x4, scoped, tag = 'scoped memory for tpu_custom_call.1']
    #allocation4 [shape = 's32[1]{0}', space=sflag, size = 0x4, scoped, tag = 'scoped memory for tpu_custom_call.1']
    #allocation5 [shape = 'u8[8192]{0}', space=vmem, size = 0x2000, scoped, tag = 'output window, operand 0, single buffered']
    %6 = vsyncpa [#allocation3], 0
    %7 = vsyncpa [#allocation4], 0
    // Predicated region
    $region2: #{tpu_custom_call.1} parent=1 // pred_check
      _
    $region3: #{tpu_custom_call.1} parent=1 // pred_check_branch
      %9 = sbr.rel (0) target = $region5
    $region4: #{tpu_custom_call.1} parent=1 // pred_region
      %11 = vsyncadd [#allocation3], 0
      %s13 = sshll.u32 %s0, 4
      %s14 = int_to_ptr.hbm [resolvable:$true] %s13
      %s15 = sshll.u32 [#allocation2], 4
      %s16 = int_to_ptr.vmem [resolvable:$true] %s15
      %18 = dma.hbm_to_vmem [thread:$0]  %s14, 256, %s16, [#allocation3]
    $region5: #{tpu_custom_call.1} parent=1 // pred_fallthru
      _
    // Predicated region
    $region6: #{tpu_custom_call.1} parent=1 // pred_check
      _
    $region7: #{tpu_custom_call.1} parent=1 // pred_check_branch
      %20 = sbr.rel (0) target = $region9
    $region8: #{tpu_custom_call.1} parent=1 // pred_region
      %22 = dma.done [#allocation3], 256
    $region9: #{tpu_custom_call.1} parent=1 // pred_fallthru
      _
    %v23 = vld [vmem:[#allocation2] sm:$0xff]
    %v24 = vld [vmem:[#allocation2 + $0x8] sm:$0xff]
    %25 = vst [vmem:[#allocation5] sm:$0xff] %v23
    %26 = vst [vmem:[#allocation5 + $0x8] sm:$0xff] %v24
    // Predicated region
    $region10: #{tpu_custom_call.1} parent=1 // pred_check
      _
    $region11: #{tpu_custom_call.1} parent=1 // pred_check_branch
      %28 = sbr.rel (0) target = $region13
    $region12: #{tpu_custom_call.1} parent=1 // pred_region
      %30 = vsyncadd [#allocation4], 0
      %s32 = sshll.u32 [#allocation5], 4
      %s33 = int_to_ptr.vmem [resolvable:$true] %s32
      %s34 = sshll.u32 %s1, 4
      %s35 = int_to_ptr.hbm [resolvable:$true] %s34
      %37 = dma.vmem_to_hbm [thread:$0]  %s33, 256, %s35, [#allocation4]
    $region13: #{tpu_custom_call.1} parent=1 // pred_fallthru
      _
    // Predicated region
    $region14: #{tpu_custom_call.1} parent=1 // pred_check
      _
    $region15: #{tpu_custom_call.1} parent=1 // pred_check_branch
      %39 = sbr.rel (0) target = $region17
    $region16: #{tpu_custom_call.1} parent=1 // pred_region
      %41 = dma.done [#allocation4], 256
    $region17: #{tpu_custom_call.1} parent=1 // pred_fallthru
      _
    %42 = vsyncpa [#allocation3], 1
    %43 = vsyncpa [#allocation4], 1

</llo_original>
